<compile_context>
chip_gen: v7x
topology: tpu7x:2x2x1
jax: 0.10.0
libtpu: 0.0.40
codegen_flags: <defaults>
</compile_context>

<pallas_src>
import functools

import jax
import jax.numpy as jnp
from jax.experimental import pallas as pl
from jax.experimental.pallas import tpu as pltpu


def _round_up(x, m):
    return ((x + m - 1) // m) * m


def _pick_tile(n, max_t, mult):
    """Tile size (multiple of `mult`, <= max_t) minimising padding of n."""
    n_r = _round_up(n, mult)
    if n_r <= max_t:
        return n_r                       # single tile, only alignment padding
    best_t, best_pad = None, None
    t = max_t
    while t >= mult:
        pad = _round_up(n, t) - n
        if best_pad is None or pad < best_pad:
            best_t, best_pad = t, pad
        t -= mult
    return best_t


# ---------------------------------------------------------------------------
# Kernels
# ---------------------------------------------------------------------------
def _fused_kernel(z_ref, w1_ref, b1_ref, w2_ref, b2_ref, out_ref):
    """Both layers in one step: used when W2 (or its N tile) is resident."""
    h = jnp.dot(z_ref[...], w1_ref[...], preferred_element_type=jnp.float32)
    h = jnp.tanh(h + b1_ref[...]).astype(jnp.bfloat16)
    logits = (
        jnp.dot(h, w2_ref[...], preferred_element_type=jnp.float32)
        + b2_ref[...]
    )
    # sigmoid(x) == 0.5 * (tanh(0.5 * x) + 1): transcendental stays on the EUP.
    out_ref[...] = (0.5 * (jnp.tanh(0.5 * logits) + 1.0)).astype(out_ref.dtype)


def _cached_h_kernel(z_ref, w1_ref, b1_ref, w2_ref, b2_ref, out_ref, h_ref):
    """2D (batch, out_len) grid: h computed once per batch tile and cached.

    CORRECTNESS NOTE: the h cache is only valid because grid axis 1 (out_len)
    is the innermost, sequentially iterated axis and is marked "arbitrary".
    Do not mark it "parallel" or reorder the grid while this scratch exists.
    """
    @pl.when(pl.program_id(1) == 0)
    def _():
        h = jnp.dot(z_ref[...], w1_ref[...], preferred_element_type=jnp.float32)
        h_ref[...] = jnp.tanh(h + b1_ref[...]).astype(h_ref.dtype)

    logits = (
        jnp.dot(h_ref[...], w2_ref[...], preferred_element_type=jnp.float32)
        + b2_ref[...]
    )
    out_ref[...] = (0.5 * (jnp.tanh(0.5 * logits) + 1.0)).astype(out_ref.dtype)


# ---------------------------------------------------------------------------
# Parameter packing (done once, hoisted out of the per-call forward)
# ---------------------------------------------------------------------------
def pack_params(params):
    """Pad weights to MXU-aligned shapes and cast matmul operands to bf16."""
    if params.get("packed", False):
        return params
    w1 = jnp.asarray(params["w1"], jnp.float32)
    b1 = jnp.asarray(params["b1"], jnp.float32).reshape(1, -1)
    w2 = jnp.asarray(params["w2"], jnp.float32)
    b2 = jnp.asarray(params["b2"], jnp.float32).reshape(1, -1)
    zdim, hdim = w1.shape
    out_len = w2.shape[1]
    zdim_p = _round_up(zdim, 128)
    hdim_p = _round_up(hdim, 128)
    out_p = _round_up(out_len, 128)
    return {
        "packed": True,
        "w1": jnp.pad(w1, ((0, zdim_p - zdim), (0, hdim_p - hdim))).astype(jnp.bfloat16),
        "b1": jnp.pad(b1, ((0, 0), (0, hdim_p - hdim))),
        "w2": jnp.pad(w2, ((0, hdim_p - hdim), (0, out_p - out_len))).astype(jnp.bfloat16),
        "b2": jnp.pad(b2, ((0, 0), (0, out_p - out_len))),
        "zdim": int(zdim),
        "out_len": int(out_len),
        "img_dims": tuple(params["img_dims"]),
        # unpadded f32 originals for the small-batch fast path
        "w1_f32": w1, "b1_f32": b1, "w2_f32": w2, "b2_f32": b2,
    }


# ---------------------------------------------------------------------------
# Kernel-path forward (jit; all path/tile decisions are static)
# ---------------------------------------------------------------------------
@functools.partial(jax.jit, static_argnames=("zdim", "out_len", "img_dims", "flat"))
def _forward_kernel(z, w1_p, b1_p, w2_p, b2_p, *, zdim, out_len, img_dims, flat):
    B = z.shape[0]
    zdim_p, hdim_p = w1_p.shape
    out_p_full = w2_p.shape[1]

    VMEM_BUDGET = 36 * 1024 * 1024      # keep plan well inside v7x's 64 MiB
    VMEM_LIMIT = 48 * 1024 * 1024       # explicit scoped limit (v5e default is 16 MiB)

    # Resident-W2 path whenever bf16 W2 fits comfortably in VMEM.
    resident = hdim_p * out_p_full * 2 <= 12 * 1024 * 1024

    # ---- batch tile: minimise padding, cap at 512, shrink to fit VMEM -----
    tb = _pick_tile(B, 512, 8)
    tn = None
    if resident:
        def fp(tb_):
            return (2 * tb_ * zdim_p * 2            # z tile (bf16, double-buffered)
                    + 2 * zdim_p * hdim_p * 2       # W1 (bf16)
                    + 2 * hdim_p * out_p_full * 2   # W2 (bf16)
                    + 2 * (hdim_p + out_p_full) * 4 # biases (f32)
                    + 2 * tb_ * out_p_full * 4      # out tile (f32, double-buffered)
                    + tb_ * (hdim_p + out_p_full) * 4)  # live f32 temporaries
        while fp(tb) > VMEM_BUDGET and tb > 8:
            tb = max(8, ((tb // 2) + 7) // 8 * 8)
    else:
        tn = _pick_tile(out_len, 2048, 128)
        def fp(tb_, tn_):
            return (2 * tb_ * zdim_p * 2
                    + 2 * zdim_p * hdim_p * 2
                    + 2 * hdim_p * tn_ * 2
                    + 2 * (hdim_p + tn_) * 4
                    + 2 * tb_ * tn_ * 4
                    + tb_ * hdim_p * 2              # h scratch (bf16)
                    + tb_ * (hdim_p + tn_) * 4)
        while fp(tb, tn) > VMEM_BUDGET and (tb > 8 or tn > 128):
            if tn > 256:
                tn = max(128, ((tn // 2) + 127) // 128 * 128)
            else:
                tb = max(8, ((tb // 2) + 7) // 8 * 8)

    b_p = _round_up(B, tb)
    gi = b_p // tb
    z_p = jnp.pad(z, ((0, b_p - B), (0, zdim_p - zdim))).astype(jnp.bfloat16)

    if resident:
        out_p = out_p_full
        cost = pl.CostEstimate(
            flops=2 * b_p * (zdim_p * hdim_p + hdim_p * out_p),
            transcendentals=b_p * (hdim_p + out_p),
            bytes_accessed=(z_p.size * 2 + w1_p.size * 2 + w2_p.size * 2
                            + b1_p.size * 4 + b2_p.size * 4 + b_p * out_p * 4),
        )
        out = pl.pallas_call(
            _fused_kernel,
            out_shape=jax.ShapeDtypeStruct((b_p, out_p), jnp.float32),
            grid_spec=pltpu.PrefetchScalarGridSpec(
                num_scalar_prefetch=0,
                grid=(gi,),
                in_specs=[
                    pl.BlockSpec((tb, zdim_p), lambda i: (i, 0)),       # z tile
                    pl.BlockSpec((zdim_p, hdim_p), lambda i: (0, 0)),   # W1 resident
                    pl.BlockSpec((1, hdim_p), lambda i: (0, 0)),        # b1 resident
                    pl.BlockSpec((hdim_p, out_p), lambda i: (0, 0)),    # W2 resident
                    pl.BlockSpec((1, out_p), lambda i: (0, 0)),         # b2 resident
                ],
                out_specs=pl.BlockSpec((tb, out_p), lambda i: (i, 0)),
            ),
            compiler_params=pltpu.CompilerParams(
                dimension_semantics=("parallel",),
                vmem_limit_bytes=VMEM_LIMIT,
            ),
            cost_estimate=cost,
        )(z_p, w1_p, b1_p, w2_p, b2_p)
    else:
        # Large-W2 fallback: tile out_len as well.
        out_p = _round_up(out_len, tn)
        pad_n = out_p - out_p_full
        w2_in = jnp.pad(w2_p, ((0, 0), (0, pad_n))) if pad_n else w2_p
        b2_in = jnp.pad(b2_p, ((0, 0), (0, pad_n))) if pad_n else b2_p
        gj = out_p // tn
        if gi == 1:
            # Single batch tile: recomputing h per N tile is nearly free
            # (memory-bound), and lets both axes shard across v7x's 2 cores.
            kernel = _fused_kernel
            scratch = []
            semantics = ("parallel", "parallel")
        else:
            kernel = _cached_h_kernel
            scratch = [pltpu.VMEM((tb, hdim_p), jnp.bfloat16)]
            semantics = ("parallel", "arbitrary")   # REQUIRED for the h cache
        cost = pl.CostEstimate(
            flops=2 * b_p * (zdim_p * hdim_p + hdim_p * out_p),
            transcendentals=b_p * (hdim_p + out_p),
            bytes_accessed=(z_p.size * 2 + w1_p.size * 2 + b1_p.size * 4
                            + gi * (w2_in.size * 2 + b2_in.size * 4)  # W2 re-streamed
                            + b_p * out_p * 4),
        )
        out = pl.pallas_call(
            kernel,
            out_shape=jax.ShapeDtypeStruct((b_p, out_p), jnp.float32),
            grid_spec=pltpu.PrefetchScalarGridSpec(
                num_scalar_prefetch=0,
                grid=(gi, gj),
                in_specs=[
                    pl.BlockSpec((tb, zdim_p), lambda i, j: (i, 0)),
                    pl.BlockSpec((zdim_p, hdim_p), lambda i, j: (0, 0)),
                    pl.BlockSpec((1, hdim_p), lambda i, j: (0, 0)),
                    pl.BlockSpec((hdim_p, tn), lambda i, j: (0, j)),
                    pl.BlockSpec((1, tn), lambda i, j: (0, j)),
                ],
                out_specs=pl.BlockSpec((tb, tn), lambda i, j: (i, j)),
                scratch_shapes=scratch,
            ),
            compiler_params=pltpu.CompilerParams(
                dimension_semantics=semantics,
                vmem_limit_bytes=VMEM_LIMIT,
            ),
            cost_estimate=cost,
        )(z_p, w1_p, b1_p, w2_in, b2_in)

    out = out[:B, :out_len]
    if not flat:
        out = out.reshape((B,) + tuple(img_dims))
    return out


# ---------------------------------------------------------------------------
# Public forward
# ---------------------------------------------------------------------------
def sheldon_mlp_generator2_forward(z, params, flat=True, use_kernel=None):
    """Forward pass of sheldonMLPGenerator2.

    Args:
      z:          [B, zdim] float32 latent codes.
      params:     raw dict (w1/b1/w2/b2/img_dims) or the output of pack_params.
      flat:       if True return [B, out_len]; else reshape to (B, *img_dims).
      use_kernel: None = auto (kernel for B >= 64, fused XLA otherwise);
                  True/False to force.
    """
    params = pack_params(params)
    B = z.shape[0]
    if use_kernel is None:
        use_kernel = B >= 64            # tiny batches: launch/DMA overhead dominates
    if not use_kernel:
        h = jnp.tanh(z @ params["w1_f32"] + params["b1_f32"])
        out = jax.nn.sigmoid(h @ params["w2_f32"] + params["b2_f32"])
        if not flat:
            out = out.reshape((B,) + tuple(params["img_dims"]))
        return out
    return _forward_kernel(
        z, params["w1"], params["b1"], params["w2"], params["b2"],
        zdim=params["zdim"], out_len=params["out_len"],
        img_dims=params["img_dims"], flat=flat,
    )


def init_params(key, zdim, hdim, img_dims):
    """Deterministic init matching nn.Linear's default U(-1/sqrt(fan_in), ...)."""
    out_len = 1
    for d in img_dims:
        out_len *= d
    k1, k2, k3, k4 = jax.random.split(key, 4)
    bound1 = 1.0 / jnp.sqrt(jnp.float32(zdim))
    bound2 = 1.0 / jnp.sqrt(jnp.float32(hdim))
    # Stored as [in_features, out_features] (transpose of torch's [out, in]).
    w1 = jax.random.uniform(k1, (zdim, hdim), jnp.float32, -bound1, bound1)
    b1 = jax.random.uniform(k2, (1, hdim), jnp.float32, -bound1, bound1)
    w2 = jax.random.uniform(k3, (hdim, out_len), jnp.float32, -bound2, bound2)
    b2 = jax.random.uniform(k4, (1, out_len), jnp.float32, -bound2, bound2)
    return {"w1": w1, "b1": b1, "w2": w2, "b2": b2, "img_dims": tuple(img_dims)}


def reference_forward(z, params, flat=True):
    h = jnp.tanh(z @ params["w1"] + params["b1"])
    out = jax.nn.sigmoid(h @ params["w2"] + params["b2"])
    if not flat:
        out = out.reshape((z.shape[0],) + tuple(params["img_dims"]))
    return out


if __name__ == "__main__":
    # Small shapes consistent with the module's MLP structure.
    B, zdim, hdim = 2, 100, 128
    img_dims = (1, 16, 16)   # out_len = 256

    key = jax.random.PRNGKey(0)
    k_param, k_z = jax.random.split(key)
    params = init_params(k_param, zdim, hdim, img_dims)
    packed = pack_params(params)          # pad + bf16 cast once, reused across calls
    z = jax.random.normal(k_z, (B, zdim), jnp.float32)

    # Force the Pallas kernel path (auto mode would use the small-batch fast path).
    out_flat = sheldon_mlp_generator2_forward(z, packed, flat=True, use_kernel=True)
    out_flat = jax.block_until_ready(out_flat)

    out_img = sheldon_mlp_generator2_forward(z, packed, flat=False, use_kernel=True)
    out_img = jax.block_until_ready(out_img)

    # Correctness check against pure-JAX f32 reference (bf16 matmul operands
    # with f32 accumulation => relaxed tolerance).
    ref_flat = reference_forward(z, params, flat=True)
    assert out_flat.shape == (B, 256)
    assert out_img.shape == (B,) + img_dims
    assert jnp.allclose(out_flat, ref_flat, atol=2e-2, rtol=2e-2)
    assert jnp.allclose(out_img.reshape(B, -1), ref_flat, atol=2e-2, rtol=2e-2)

    # Auto mode (small-batch fast path) also matches.
    out_auto = jax.block_until_ready(
        sheldon_mlp_generator2_forward(z, packed, flat=True))
    assert jnp.allclose(out_auto, ref_flat, atol=2e-2, rtol=2e-2)

    print("KERNEL_OK")
</pallas_src>

<mosaic_0001>
module attributes {stable_mosaic.version = 11 : i64} {
  func.func @_fused_kernel(%arg0: i32, %arg1: memref<8x128xbf16, #tpu.memory_space<vmem>>, %arg2: memref<128x128xbf16, #tpu.memory_space<vmem>>, %arg3: memref<1x128xf32, #tpu.memory_space<vmem>>, %arg4: memref<128x256xbf16, #tpu.memory_space<vmem>>, %arg5: memref<1x256xf32, #tpu.memory_space<vmem>>, %arg6: memref<8x256xf32, #tpu.memory_space<vmem>>) attributes {dimension_semantics = [#tpu.dimension_semantics<parallel>], iteration_bounds = array<i64: 1>, scalar_prefetch = 0 : i64, scratch_operands = 0 : i64, tpu.core_type = #tpu.core_type<tc>, window_params = [{transform_indices = @transform_0, window_bounds = array<i64: 8, 128>}, {pipeline_mode = #tpu.pipeline_mode<synchronous>, transform_indices = @transform_1, window_bounds = array<i64: 128, 128>}, {pipeline_mode = #tpu.pipeline_mode<synchronous>, transform_indices = @transform_2, window_bounds = array<i64: 1, 128>}, {pipeline_mode = #tpu.pipeline_mode<synchronous>, transform_indices = @transform_3, window_bounds = array<i64: 128, 256>}, {pipeline_mode = #tpu.pipeline_mode<synchronous>, transform_indices = @transform_4, window_bounds = array<i64: 1, 256>}, {transform_indices = @transform_5, window_bounds = array<i64: 8, 256>}]} {
    %c0 = arith.constant 0 : index
    %c0_0 = arith.constant 0 : index
    %0 = vector.load %arg1[%c0, %c0_0] : memref<8x128xbf16, #tpu.memory_space<vmem>>, vector<8x128xbf16>
    %c0_1 = arith.constant 0 : index
    %c0_2 = arith.constant 0 : index
    %1 = vector.load %arg2[%c0_1, %c0_2] : memref<128x128xbf16, #tpu.memory_space<vmem>>, vector<128x128xbf16>
    %cst = arith.constant dense<0.000000e+00> : vector<8x128xf32>
    %2 = tpu.matmul %0, %1, %cst {dimension_numbers = #tpu.dot_dimension_numbers<[1], [0], [0], [1], [0, 0, 1, 1], [], []>} : vector<8x128xbf16>, vector<128x128xbf16>, vector<8x128xf32> -> vector<8x128xf32>
    %c0_3 = arith.constant 0 : index
    %c0_4 = arith.constant 0 : index
    %3 = vector.load %arg3[%c0_3, %c0_4] : memref<1x128xf32, #tpu.memory_space<vmem>>, vector<1x128xf32>
    %4 = vector.broadcast %3 : vector<1x128xf32> to vector<8x128xf32>
    %5 = arith.addf %2, %4 : vector<8x128xf32>
    %6 = math.tanh %5 : vector<8x128xf32>
    %7 = arith.truncf %6 : vector<8x128xf32> to vector<8x128xbf16>
    %c0_5 = arith.constant 0 : index
    %c0_6 = arith.constant 0 : index
    %8 = vector.load %arg4[%c0_5, %c0_6] : memref<128x256xbf16, #tpu.memory_space<vmem>>, vector<128x256xbf16>
    %cst_7 = arith.constant dense<0.000000e+00> : vector<8x256xf32>
    %9 = tpu.matmul %7, %8, %cst_7 {dimension_numbers = #tpu.dot_dimension_numbers<[1], [0], [0], [1], [0, 0, 1, 1], [], []>} : vector<8x128xbf16>, vector<128x256xbf16>, vector<8x256xf32> -> vector<8x256xf32>
    %c0_8 = arith.constant 0 : index
    %c0_9 = arith.constant 0 : index
    %10 = vector.load %arg5[%c0_8, %c0_9] : memref<1x256xf32, #tpu.memory_space<vmem>>, vector<1x256xf32>
    %11 = vector.broadcast %10 : vector<1x256xf32> to vector<8x256xf32>
    %12 = arith.addf %9, %11 : vector<8x256xf32>
    %cst_10 = arith.constant 5.000000e-01 : f32
    %13 = vector.broadcast %cst_10 : f32 to vector<8x256xf32>
    %14 = arith.mulf %13, %12 : vector<8x256xf32>
    %15 = math.tanh %14 : vector<8x256xf32>
    %cst_11 = arith.constant 1.000000e+00 : f32
    %16 = vector.broadcast %cst_11 : f32 to vector<8x256xf32>
    %17 = arith.addf %15, %16 : vector<8x256xf32>
    %cst_12 = arith.constant 5.000000e-01 : f32
    %18 = vector.broadcast %cst_12 : f32 to vector<8x256xf32>
    %19 = arith.mulf %18, %17 : vector<8x256xf32>
    %c0_13 = arith.constant 0 : index
    %c0_14 = arith.constant 0 : index
    %20 = vector.load %arg6[%c0_13, %c0_14] : memref<8x256xf32, #tpu.memory_space<vmem>>, vector<8x256xf32>
    tpu.vector_store %arg6[%c0_13, %c0_14], %19 {strides = array<i32>} : memref<8x256xf32, #tpu.memory_space<vmem>>, vector<8x256xf32>,
    return
  }
  func.func @transform_0(%arg0: i32) -> (i32, i32) {
    %c0_i32 = arith.constant 0 : i32
    %c0_i32_0 = arith.constant 0 : i32
    return %arg0, %c0_i32 : i32, i32
  }
  func.func @transform_1(%arg0: i32) -> (i32, i32) {
    %c0_i32 = arith.constant 0 : i32
    %c0_i32_0 = arith.constant 0 : i32
    %c0_i32_1 = arith.constant 0 : i32
    return %c0_i32, %c0_i32_0 : i32, i32
  }
  func.func @transform_2(%arg0: i32) -> (i32, i32) {
    %c0_i32 = arith.constant 0 : i32
    %c0_i32_0 = arith.constant 0 : i32
    %c0_i32_1 = arith.constant 0 : i32
    return %c0_i32, %c0_i32_0 : i32, i32
  }
  func.func @transform_3(%arg0: i32) -> (i32, i32) {
    %c0_i32 = arith.constant 0 : i32
    %c0_i32_0 = arith.constant 0 : i32
    %c0_i32_1 = arith.constant 0 : i32
    return %c0_i32, %c0_i32_0 : i32, i32
  }
  func.func @transform_4(%arg0: i32) -> (i32, i32) {
    %c0_i32 = arith.constant 0 : i32
    %c0_i32_0 = arith.constant 0 : i32
    %c0_i32_1 = arith.constant 0 : i32
    return %c0_i32, %c0_i32_0 : i32, i32
  }
  func.func @transform_5(%arg0: i32) -> (i32, i32) {
    %c0_i32 = arith.constant 0 : i32
    %c0_i32_0 = arith.constant 0 : i32
    return %arg0, %c0_i32 : i32, i32
  }
}

</mosaic_0001>

<llo_original>
// kernel: _forward_kernel.1
$region0: #{_forward_kernel.1}
  #allocation0 [shape = 'u32[]', space=smem, size = 0x4, offset = 0x4, fixed_abs, tag = 'smem constant byte address 0x4 - core index']
  #allocation1 [shape = 'u32[144,128]{1,0:T(1,128)}', space=vmem, size = 0x12000, scoped, tag = 'internal scratch']
  %s0 = inlined_call_operand.vmem [shape: bf16[8,128], index: 0, kind: input, shape index: {}]
  %s1 = inlined_call_operand.hbm [shape: bf16[128,128], index: 1, kind: input, shape index: {}]
  %s2 = inlined_call_operand.vmem [shape: f32[1,128], index: 2, kind: input, shape index: {}]
  %s3 = inlined_call_operand.hbm [shape: bf16[128,256], index: 3, kind: input, shape index: {}]
  %s4 = inlined_call_operand.vmem [shape: f32[1,256], index: 4, kind: input, shape index: {}]
  %s5 = inlined_call_operand.vmem [shape: f32[8,256], index: 5, kind: output, shape index: {}]
  %s6 = sld [smem:[#allocation0]]
  $region38: #{_forward_kernel.1} parent=0
    _
  %s8 = ssub.s32 1, %s6
  %s9 = scalar_select 0, %s8, %s6
  $region1: #{_forward_kernel.1} parent=0
    #allocation2 [shape = 'u8[32768]{0}', space=vmem, size = 0x8000, scoped, tag = 'input window, operand 1, single buffered']
    #allocation3 [shape = 's32[1]{0}', space=sflag, size = 0x4, scoped, tag = 'scoped memory for _forward_kernel.1']
    #allocation4 [shape = 'u8[65536]{0}', space=vmem, size = 0x10000, scoped, tag = 'input window, operand 3, single buffered']
    #allocation5 [shape = 's32[1]{0}', space=sflag, size = 0x4, scoped, tag = 'scoped memory for _forward_kernel.1']
    %10 = vsyncpa [#allocation3], 0
    %11 = vsyncpa [#allocation5], 0
    // Predicated region
    $region2: #{_forward_kernel.1} parent=1 // pred_check
      _
    $region3: #{_forward_kernel.1} parent=1 // pred_check_branch
      %13 = sbr.rel (0) target = $region5
    $region4: #{_forward_kernel.1} parent=1 // pred_region
      _
    $region5: #{_forward_kernel.1} parent=1 // pred_fallthru
      _
    // Predicated region
    $region6: #{_forward_kernel.1} parent=1 // pred_check
      _
    $region7: #{_forward_kernel.1} parent=1 // pred_check_branch
      %15 = sbr.rel (0) target = $region9
    $region8: #{_forward_kernel.1} parent=1 // pred_region
      %s17 = ssub.s32 1024, 1024
      %18 = vsyncadd [#allocation3], %s17
      %s19 = sshll.u32 [#allocation2], 4
      %s20 = int_to_ptr.vmem [resolvable:$true] %s19
      %25 = dma.hbm_to_vmem [thread:$0]  %s1, 1024, %s20, [#allocation3], 64, 64, 4
    $region9: #{_forward_kernel.1} parent=1 // pred_fallthru
      _
    // Predicated region
    $region10: #{_forward_kernel.1} parent=1 // pred_check
      _
    $region11: #{_forward_kernel.1} parent=1 // pred_check_branch
      %27 = sbr.rel (0) target = $region13
    $region12: #{_forward_kernel.1} parent=1 // pred_region
      _
    $region13: #{_forward_kernel.1} parent=1 // pred_fallthru
      _
    // Predicated region
    $region14: #{_forward_kernel.1} parent=1 // pred_check
      _
    $region15: #{_forward_kernel.1} parent=1 // pred_check_branch
      %29 = sbr.rel (0) target = $region17
    $region16: #{_forward_kernel.1} parent=1 // pred_region
      %s31 = ssub.s32 2048, 2048
      %32 = vsyncadd [#allocation5], %s31
      %s33 = sshll.u32 [#allocation4], 4
      %s34 = int_to_ptr.vmem [resolvable:$true] %s33
      %39 = dma.hbm_to_vmem [thread:$0]  %s3, 2048, %s34, [#allocation5], 128, 128, 8
    $region17: #{_forward_kernel.1} parent=1 // pred_fallthru
      _
    // Predicated region
    $region18: #{_forward_kernel.1} parent=1 // pred_check
      _
    $region19: #{_forward_kernel.1} parent=1 // pred_check_branch
      %41 = sbr.rel (0) target = $region21
    $region20: #{_forward_kernel.1} parent=1 // pred_region
      _
    $region21: #{_forward_kernel.1} parent=1 // pred_fallthru
      _
    // Predicated region
    $region22: #{_forward_kernel.1} parent=1 // pred_check
      _
    $region23: #{_forward_kernel.1} parent=1 // pred_check_branch
      %43 = sbr.rel (0) target = $region25
    $region24: #{_forward_kernel.1} parent=1 // pred_region
      %44 = dma.done [#allocation3], 1024
    $region25: #{_forward_kernel.1} parent=1 // pred_fallthru
      _
    // Predicated region
    $region26: #{_forward_kernel.1} parent=1 // pred_check
      _
    $region27: #{_forward_kernel.1} parent=1 // pred_check_branch
      %46 = sbr.rel (0) target = $region29
    $region28: #{_forward_kernel.1} parent=1 // pred_region
      %47 = dma.done [#allocation5], 2048
    $region29: #{_forward_kernel.1} parent=1 // pred_fallthru
      _
    %v49 = vld [vmem:[%s0] sm:$0xf]
    %v50 = vld [vmem:[#allocation2] sm:$0xf]
    %v51 = vld [vmem:[#allocation2 + $0x4] sm:$0xf]
    %v52 = vld [vmem:[#allocation2 + $0x8] sm:$0xf]
    %v53 = vld [vmem:[#allocation2 + $0xc] sm:$0xf]
    %v54 = vld [vmem:[#allocation2 + $0x10] sm:$0xf]
    %v55 = vld [vmem:[#allocation2 + $0x14] sm:$0xf]
    %v56 = vld [vmem:[#allocation2 + $0x18] sm:$0xf]
    %v57 = vld [vmem:[#allocation2 + $0x1c] sm:$0xf]
    %v58 = vld [vmem:[#allocation2 + $0x20] sm:$0xf]
    %v59 = vld [vmem:[#allocation2 + $0x24] sm:$0xf]
    %v60 = vld [vmem:[#allocation2 + $0x28] sm:$0xf]
    %v61 = vld [vmem:[#allocation2 + $0x2c] sm:$0xf]
    %v62 = vld [vmem:[#allocation2 + $0x30] sm:$0xf]
    %v63 = vld [vmem:[#allocation2 + $0x34] sm:$0xf]
    %v64 = vld [vmem:[#allocation2 + $0x38] sm:$0xf]
    %v65 = vld [vmem:[#allocation2 + $0x3c] sm:$0xf]
    %v66 = vld [vmem:[%s2] sm:$0x1]
    %v68 = vlaneseq
    %v69 = vshrl.u32 %v68, 7
    %v70 = vsub.s32 0, %v69
    %v71 = vrot.slane %v66, %v70
    %v89 = vunpack.c.l.b16 %v50
    %v90 = vunpack.c.l.b16 %v51
    %v91 = vunpack.c.l.b16 %v52
    %v92 = vunpack.c.l.b16 %v53
    %v93 = vunpack.c.l.b16 %v54
    %v94 = vunpack.c.l.b16 %v55
    %v95 = vunpack.c.l.b16 %v56
    %v96 = vunpack.c.l.b16 %v57
    %v97 = vunpack.c.l.b16 %v58
    %v98 = vunpack.c.l.b16 %v59
    %v99 = vunpack.c.l.b16 %v60
    %v100 = vunpack.c.l.b16 %v61
    %v101 = vunpack.c.l.b16 %v62
    %v102 = vunpack.c.l.b16 %v63
    %v103 = vunpack.c.l.b16 %v64
    %v104 = vunpack.c.l.b16 %v65
    %v105 = vpack.c.b16 %v90, %v89
    %v106 = vpack.c.b16 %v92, %v91
    %v107 = vpack.c.b16 %v94, %v93
    %v108 = vpack.c.b16 %v96, %v95
    %v109 = vpack.c.b16 %v98, %v97
    %v110 = vpack.c.b16 %v100, %v99
    %v111 = vpack.c.b16 %v102, %v101
    %v112 = vpack.c.b16 %v104, %v103
    %121 = vmatprep.subr.bf16.mxu0 0
    %122 = vmatpush1.bf16.msra.mxu0 %v105
    %123 = vmatprep.subr.bf16.mxu0 0
    %124 = vmatpush1.bf16.msra.mxu0 %v106
    %125 = vmatprep.subr.bf16.mxu0 0
    %126 = vmatpush1.bf16.msra.mxu0 %v107
    %127 = vmatprep.subr.bf16.mxu0 0
    %128 = vmatpush1.bf16.msra.mxu0 %v108
    %129 = vmatprep.subr.bf16.mxu0 0
    %130 = vmatpush1.bf16.msra.mxu0 %v109
    %131 = vmatprep.subr.bf16.mxu0 0
    %132 = vmatpush1.bf16.msra.mxu0 %v110
    %133 = vmatprep.subr.bf16.mxu0 0
    %134 = vmatpush1.bf16.msra.mxu0 %v111
    %135 = vmatprep.subr.bf16.mxu0 0
    %136 = vmatpush1.bf16.msra.mxu0 %v112
    %137 = vmatprep.subr.bf16.mxu0 0
    %138 = vmatpush1.bf16.msra.mxu0 0
    %139 = vmatprep.subr.bf16.mxu0 0
    %140 = vmatpush1.bf16.msra.mxu0 0
    %141 = vmatprep.subr.bf16.mxu0 0
    %142 = vmatpush1.bf16.msra.mxu0 0
    %143 = vmatprep.subr.bf16.mxu0 0
    %144 = vmatpush1.bf16.msra.mxu0 0
    %145 = vmatprep.subr.bf16.mxu0 0
    %146 = vmatpush1.bf16.msra.mxu0 0
    %147 = vmatprep.subr.bf16.mxu0 0
    %148 = vmatpush1.bf16.msra.mxu0 0
    %149 = vmatprep.subr.bf16.mxu0 0
    %150 = vmatpush1.bf16.msra.mxu0 0
    %151 = vmatprep.subr.bf16.mxu0 0
    %152 = vmatpush1.bf16.msra.mxu0 0
    %153 = vmatprep.mubr.bf16.mxu0 0
    %154 = vmatmul.mubr.bf16.gmra.mrb[0].mxu0 %v49
    %v155 = vpop.f32.mrb[0].mxu0
    %v156 = vadd.f32 %v71, %v155
    %v157 = vpop.f32.mrb[0].mxu0
    %v158 = vpop.f32.mrb[0].mxu0
    %v159 = vpop.f32.mrb[0].mxu0
    %160 = vdwg.mxu0
    %v161 = vtanh.pop %v156
    %v162 = vpack.c.bf16 %v161, %v161
    %v163 = vld [vmem:[#allocation4] sm:$0xff]
    %v164 = vld [vmem:[#allocation4 + $0x8] sm:$0xff]
    %v165 = vld [vmem:[#allocation4 + $0x10] sm:$0xff]
    %v166 = vld [vmem:[#allocation4 + $0x18] sm:$0xff]
    %v167 = vld [vmem:[#allocation4 + $0x20] sm:$0xff]
    %v168 = vld [vmem:[#allocation4 + $0x28] sm:$0xff]
    %v169 = vld [vmem:[#allocation4 + $0x30] sm:$0xff]
    %v170 = vld [vmem:[#allocation4 + $0x38] sm:$0xff]
    %v171 = vld [vmem:[#allocation4 + $0x40] sm:$0xff]
    %v172 = vld [vmem:[#allocation4 + $0x48] sm:$0xff]
    %v173 = vld [vmem:[#allocation4 + $0x50] sm:$0xff]
    %v174 = vld [vmem:[#allocation4 + $0x58] sm:$0xff]
    %v175 = vld [vmem:[#allocation4 + $0x60] sm:$0xff]
    %v176 = vld [vmem:[#allocation4 + $0x68] sm:$0xff]
    %v177 = vld [vmem:[#allocation4 + $0x70] sm:$0xff]
    %v178 = vld [vmem:[#allocation4 + $0x78] sm:$0xff]
    %v179 = vld [vmem:[%s4] sm:$0x3]
    %v181 = vlaneseq
    %v182 = vshrl.u32 %v181, 7
    %v183 = vsub.s32 0, %v182
    %v184 = vrot.slane %v179, %v183
    %v185 = vlaneseq
    %v186 = vshrl.u32 %v185, 7
    %v187 = vsub.s32 1, %v186
    %v188 = vrot.slane %v179, %v187
    %v207 = vunpack.c.l.b16 %v163
    %v208 = vunpack.c.h.b16 %v163
    %v209 = vunpack.c.l.b16 %v164
    %v210 = vunpack.c.h.b16 %v164
    %v211 = vunpack.c.l.b16 %v165
    %v212 = vunpack.c.h.b16 %v165
    %v213 = vunpack.c.l.b16 %v166
    %v214 = vunpack.c.h.b16 %v166
    %v215 = vunpack.c.l.b16 %v167
    %v216 = vunpack.c.h.b16 %v167
    %v217 = vunpack.c.l.b16 %v168
    %v218 = vunpack.c.h.b16 %v168
    %v219 = vunpack.c.l.b16 %v169
    %v220 = vunpack.c.h.b16 %v169
    %v221 = vunpack.c.l.b16 %v170
    %v222 = vunpack.c.h.b16 %v170
    %v223 = vunpack.c.l.b16 %v171
    %v224 = vunpack.c.h.b16 %v171
    %v225 = vunpack.c.l.b16 %v172
    %v226 = vunpack.c.h.b16 %v172
    %v227 = vunpack.c.l.b16 %v173
    %v228 = vunpack.c.h.b16 %v173
    %v229 = vunpack.c.l.b16 %v174
    %v230 = vunpack.c.h.b16 %v174
    %v231 = vunpack.c.l.b16 %v175
    %v232 = vunpack.c.h.b16 %v175
    %v233 = vunpack.c.l.b16 %v176
    %v234 = vunpack.c.h.b16 %v176
    %v235 = vunpack.c.l.b16 %v177
    %v236 = vunpack.c.h.b16 %v177
    %v237 = vunpack.c.l.b16 %v178
    %v238 = vunpack.c.h.b16 %v178
    %v239 = vpack.c.b16 %v209, %v207
    %v240 = vpack.c.b16 %v210, %v208
    %v241 = vpack.c.b16 %v213, %v211
    %v242 = vpack.c.b16 %v214, %v212
    %v243 = vpack.c.b16 %v217, %v215
    %v244 = vpack.c.b16 %v218, %v216
    %v245 = vpack.c.b16 %v221, %v219
    %v246 = vpack.c.b16 %v222, %v220
    %v247 = vpack.c.b16 %v225, %v223
    %v248 = vpack.c.b16 %v226, %v224
    %v249 = vpack.c.b16 %v229, %v227
    %v250 = vpack.c.b16 %v230, %v228
    %v251 = vpack.c.b16 %v233, %v231
    %v252 = vpack.c.b16 %v234, %v232
    %v253 = vpack.c.b16 %v237, %v235
    %v254 = vpack.c.b16 %v238, %v236
    %271 = vmatprep.subr.bf16.mxu0 %v240
    %272 = vmatpush1.bf16.msra.mxu0 %v239
    %273 = vmatprep.subr.bf16.mxu0 %v242
    %274 = vmatpush1.bf16.msra.mxu0 %v241
    %275 = vmatprep.subr.bf16.mxu0 %v244
    %276 = vmatpush1.bf16.msra.mxu0 %v243
    %277 = vmatprep.subr.bf16.mxu0 %v246
    %278 = vmatpush1.bf16.msra.mxu0 %v245
    %279 = vmatprep.subr.bf16.mxu0 %v248
    %280 = vmatpush1.bf16.msra.mxu0 %v247
    %281 = vmatprep.subr.bf16.mxu0 %v250
    %282 = vmatpush1.bf16.msra.mxu0 %v249
    %283 = vmatprep.subr.bf16.mxu0 %v252
    %284 = vmatpush1.bf16.msra.mxu0 %v251
    %285 = vmatprep.subr.bf16.mxu0 %v254
    %286 = vmatpush1.bf16.msra.mxu0 %v253
    %287 = vmatprep.subr.bf16.mxu0 0
    %288 = vmatpush1.bf16.msra.mxu0 0
    %289 = vmatprep.subr.bf16.mxu0 0
    %290 = vmatpush1.bf16.msra.mxu0 0
    %291 = vmatprep.subr.bf16.mxu0 0
    %292 = vmatpush1.bf16.msra.mxu0 0
    %293 = vmatprep.subr.bf16.mxu0 0
    %294 = vmatpush1.bf16.msra.mxu0 0
    %295 = vmatprep.subr.bf16.mxu0 0
    %296 = vmatpush1.bf16.msra.mxu0 0
    %297 = vmatprep.subr.bf16.mxu0 0
    %298 = vmatpush1.bf16.msra.mxu0 0
    %299 = vmatprep.subr.bf16.mxu0 0
    %300 = vmatpush1.bf16.msra.mxu0 0
    %301 = vmatprep.subr.bf16.mxu0 0
    %302 = vmatpush1.bf16.msra.mxu0 0
    %303 = vmatprep.mubr.bf16.mxu0 0
    %304 = vmatmul.mubr.bf16.gmra.mrb[0].mxu0 %v162
    %v305 = vpop.f32.mrb[0].mxu0
    %v306 = vadd.f32 %v184, %v305
    %v307 = vpop.f32.mrb[0].mxu0
    %v308 = vadd.f32 %v188, %v307
    %v309 = vpop.f32.mrb[0].mxu0
    %v310 = vpop.f32.mrb[0].mxu0
    %311 = vdwg.mxu0
    %v312 = vmul.f32 %v306, 0.5
    %v313 = vmul.f32 %v308, 0.5
    %v314 = vtanh.pop %v312
    %v315 = vtanh.pop %v313
    %v316 = vadd.f32 %v314, 1.0
    %v317 = vadd.f32 %v315, 1.0
    %v318 = vmul.f32 %v316, 0.5
    %v319 = vmul.f32 %v317, 0.5
    %320 = vst [vmem:[%s5] sm:$0xff] %v318
    %321 = vst [vmem:[%s5 + $0x8] sm:$0xff] %v319
    // Predicated region
    $region30: #{_forward_kernel.1} parent=1 // pred_check
      _
    $region31: #{_forward_kernel.1} parent=1 // pred_check_branch
      %323 = sbr.rel (0) target = $region33
    $region32: #{_forward_kernel.1} parent=1 // pred_region
      _
    $region33: #{_forward_kernel.1} parent=1 // pred_fallthru
      _
    // Predicated region
    $region34: #{_forward_kernel.1} parent=1 // pred_check
      _
    $region35: #{_forward_kernel.1} parent=1 // pred_check_branch
      %325 = sbr.rel (0) target = $region37
    $region36: #{_forward_kernel.1} parent=1 // pred_region
      _
    $region37: #{_forward_kernel.1} parent=1 // pred_fallthru
      _
    %326 = vsyncpa [#allocation3], 1
    %327 = vsyncpa [#allocation5], 1

</llo_original>
